<compile_context>
chip_gen: v5e
topology: v5e:2x2
jax: 0.10.0
libtpu: 0.0.40
codegen_flags: <defaults>
</compile_context>

<pallas_src>
import math
import functools

import jax
import jax.numpy as jnp
from jax.experimental import pallas as pl
from jax.experimental.pallas import tpu as pltpu

EMBED_DIM = 48
NUM_HEADS = 4
HEAD_DIM = EMBED_DIM // NUM_HEADS        # 12
HEAD_DIM_PAD = 16                        # zero-padded head dim (lane aligned)
LN_EPS = 1e-5
_SUBLANE = 8


def _mhsa_kernel(x_ref, gamma_ref, beta_ref, wqkv_ref, bqkv_ref, kbias_ref,
                 wo_ref, bo_ref, o_ref, *, bb, seq, heads, dpad):
    """One row-tile of (rows, E) = (bb * seq, E) tokens per grid step."""
    rows = x_ref.shape[0]                 # rows = bb * seq
    chunk = 4 * dpad                      # per-head column group [q|k|v|pad]
    n = heads * bb                        # attention batch = (head, batch-elem)

    # ---- LayerNorm over the embedding dim (f32 VPU math; v5e has no bf16 VPU) ----
    x = x_ref[...]
    mean = jnp.mean(x, axis=-1, keepdims=True)
    var = jnp.mean((x - mean) ** 2, axis=-1, keepdims=True)
    xn = (x - mean) * jax.lax.rsqrt(var + LN_EPS)
    xn = xn * gamma_ref[...] + beta_ref[...]

    # ---- fused QKV projection: bf16 MXU operands, f32 accumulation ----
    # 1/sqrt(head_dim) is already folded into the Q columns of wqkv/bqkv.
    qkv = jnp.dot(xn.astype(jnp.bfloat16), wqkv_ref[...],
                  preferred_element_type=jnp.float32) + bqkv_ref[...]  # (rows, H*chunk)

    # ---- head split: 4 aligned 64-wide extracts + free leading-dim reshape ----
    qkv_h = jnp.stack([qkv[:, h * chunk:(h + 1) * chunk] for h in range(heads)],
                      axis=0)                              # (H, rows, chunk)
    qkv_h = qkv_h.reshape(n, seq, chunk)                   # (h,b,s,c) order kept
    q = qkv_h[:, :, 0 * dpad:1 * dpad].astype(jnp.bfloat16)   # pre-scaled
    k = qkv_h[:, :, 1 * dpad:2 * dpad].astype(jnp.bfloat16)
    v = qkv_h[:, :, 2 * dpad:3 * dpad].astype(jnp.bfloat16)

    # ---- attention, batched over (head, batch-element): exact (S, S) blocks ----
    scores = jnp.einsum('nsd,ntd->nst', q, k,
                        preferred_element_type=jnp.float32)    # (n, seq, seq)
    scores = scores + kbias_ref[...][None]                     # pad-key bias (0 / -1e9)
    scores = scores - jnp.max(scores, axis=-1, keepdims=True)
    p = jnp.exp(scores)                                        # f32 softmax math
    p = p * pl.reciprocal(jnp.sum(p, axis=-1, keepdims=True), approx=True)

    ctx = jnp.einsum('nst,ntd->nsd', p.astype(jnp.bfloat16), v,
                     preferred_element_type=jnp.float32)       # (n, seq, dpad)

    # ---- output projection: head-batched matmul, heads summed (no lane concat) ----
    ctx = ctx.reshape(heads, rows, dpad).astype(jnp.bfloat16)  # free reshape
    out_h = jnp.einsum('hrd,hde->hre', ctx, wo_ref[...],
                       preferred_element_type=jnp.float32)     # (H, rows, E)
    out = out_h[0]
    for h in range(1, heads):
        out = out + out_h[h]
    out = out + bo_ref[...]
    o_ref[...] = out.astype(o_ref.dtype)


def _choose_batch_block(batch, seq_pad, target_rows, min_steps=2):
    """Largest divisor bb of `batch` with bb*seq_pad <= target_rows, preferring
    at least `min_steps` grid steps so v7x's 2 TensorCores both get work."""
    divisors = [d for d in range(1, batch + 1) if batch % d == 0]
    fits = [d for d in divisors if d * seq_pad <= target_rows] or [1]
    multi = [d for d in fits if batch // d >= min_steps]
    return max(multi) if multi else max(fits)


def mhsa_block(x, params, *, target_rows=1024):
    """x: (B, S, E) float32.  Returns the attention block output, shape (B, S, E)."""
    B, S, E = x.shape
    assert E == EMBED_DIM
    gamma, beta, wq, wk, wv, bq, bk, bv, wo, bo = params

    H, D, DP = NUM_HEADS, HEAD_DIM, HEAD_DIM_PAD
    chunk = 4 * DP
    scale = 1.0 / math.sqrt(D)

    # ---- fused, head-major, lane-aligned QKV weight / bias (scale folded into Q) ----
    def _heads_cols(w):                       # (R, E) -> (R, H, D)
        return w.reshape(w.shape[0], H, D)

    def _pad_d(a):                            # (..., D) -> (..., DP), zero pad
        return jnp.pad(a, [(0, 0)] * (a.ndim - 1) + [(0, DP - D)])

    wq_h = _pad_d(_heads_cols(wq * scale))
    wk_h = _pad_d(_heads_cols(wk))
    wv_h = _pad_d(_heads_cols(wv))
    wqkv = jnp.stack([wq_h, wk_h, wv_h, jnp.zeros_like(wq_h)],
                     axis=2).reshape(E, H * chunk)            # (E, 256)

    bq_h = _pad_d(_heads_cols(bq * scale))
    bk_h = _pad_d(_heads_cols(bk))
    bv_h = _pad_d(_heads_cols(bv))
    bqkv = jnp.stack([bq_h, bk_h, bv_h, jnp.zeros_like(bq_h)],
                     axis=2).reshape(1, H * chunk)            # (1, 256)

    # per-head output-projection weight with zero rows in the padded head dims
    wo_heads = jnp.pad(wo.reshape(H, D, E), ((0, 0), (0, DP - D), (0, 0)))  # (H, 16, E)

    # ---- pad the sequence to a sublane multiple; mask padded keys ----
    s_pad = -(-S // _SUBLANE) * _SUBLANE
    if s_pad != S:
        x = jnp.pad(x, ((0, 0), (0, s_pad - S), (0, 0)))
    kbias = jnp.where(jnp.arange(s_pad) < S, 0.0, -1e9).astype(jnp.float32)
    kbias = kbias.reshape(1, s_pad)

    # ---- fold the batch into row tiles (LN / QKV / out-proj only) ----
    bb = _choose_batch_block(B, s_pad, target_rows)
    rows = bb * s_pad
    M = B * s_pad
    x2 = x.reshape(M, E)
    grid = (B // bb,)

    const2 = lambda i: (0, 0)
    in_specs = [
        pl.BlockSpec((rows, E), lambda i: (i, 0)),        # x row-tile
        pl.BlockSpec((1, E), const2),                     # gamma (resident)
        pl.BlockSpec((1, E), const2),                     # beta
        pl.BlockSpec((E, H * chunk), const2),             # fused Wqkv (bf16)
        pl.BlockSpec((1, H * chunk), const2),             # fused bqkv (f32)
        pl.BlockSpec((1, s_pad), const2),                 # pad-key bias
        pl.BlockSpec((H, DP, E), lambda i: (0, 0, 0)),    # Wo per head (bf16)
        pl.BlockSpec((1, E), const2),                     # bo
    ]
    out_spec = pl.BlockSpec((rows, E), lambda i: (i, 0))

    kernel = functools.partial(_mhsa_kernel, bb=bb, seq=s_pad, heads=H, dpad=DP)

    y2 = pl.pallas_call(
        kernel,
        out_shape=jax.ShapeDtypeStruct((M, E), x.dtype),
        grid=grid,
        in_specs=in_specs,
        out_specs=out_spec,
        compiler_params=pltpu.CompilerParams(
            dimension_semantics=("parallel",),            # row-tiles independent
            vmem_limit_bytes=32 * 1024 * 1024,            # safe on v5e/v6e/v7x
        ),
    )(x2, gamma, beta, wqkv.astype(jnp.bfloat16), bqkv, kbias,
      wo_heads.astype(jnp.bfloat16), bo)

    y = y2.reshape(B, s_pad, E)
    return y[:, :S] if s_pad != S else y


def make_params(key):
    """Deterministic synthetic parameters matching the PyTorch module's shapes."""
    ks = jax.random.split(key, 8)
    E = EMBED_DIM
    # LayerNorm: weight=1, bias=0 (PyTorch default init)
    gamma = jnp.ones((1, E), jnp.float32)
    beta = jnp.zeros((1, E), jnp.float32)
    # in_proj_weight is (3E, E) in PyTorch (output-major); generate the three
    # (E, E) chunks and transpose to input-major.
    s = 0.1
    wq_t = (s * jax.random.normal(ks[0], (E, E), jnp.float32)).T
    wk_t = (s * jax.random.normal(ks[1], (E, E), jnp.float32)).T
    wv_t = (s * jax.random.normal(ks[2], (E, E), jnp.float32)).T
    bq = (s * jax.random.normal(ks[3], (1, E), jnp.float32))
    bk = (s * jax.random.normal(ks[4], (1, E), jnp.float32))
    bv = (s * jax.random.normal(ks[5], (1, E), jnp.float32))
    wo_t = (s * jax.random.normal(ks[6], (E, E), jnp.float32)).T
    bo = (s * jax.random.normal(ks[7], (1, E), jnp.float32))
    return (gamma, beta, wq_t, wk_t, wv_t, bq, bk, bv, wo_t, bo)


def reference(x, params):
    """Pure-JAX f32 reference mirroring LayerNorm + nn.MultiheadAttention forward."""
    gamma, beta, wq, wk, wv, bq, bk, bv, wo, bo = params
    mean = jnp.mean(x, axis=-1, keepdims=True)
    var = jnp.mean((x - mean) ** 2, axis=-1, keepdims=True)
    xn = (x - mean) / jnp.sqrt(var + LN_EPS) * gamma + beta
    q = xn @ wq + bq
    k = xn @ wk + bk
    v = xn @ wv + bv
    B, S, E = x.shape
    H, D = NUM_HEADS, HEAD_DIM
    q = q.reshape(B, S, H, D).transpose(0, 2, 1, 3)
    k = k.reshape(B, S, H, D).transpose(0, 2, 1, 3)
    v = v.reshape(B, S, H, D).transpose(0, 2, 1, 3)
    scores = jnp.einsum('bhsd,bhtd->bhst', q, k) / math.sqrt(D)
    p = jax.nn.softmax(scores, axis=-1)
    ctx = jnp.einsum('bhst,bhtd->bhsd', p, v)
    ctx = ctx.transpose(0, 2, 1, 3).reshape(B, S, E)
    return ctx @ wo + bo


if __name__ == "__main__":
    key = jax.random.PRNGKey(0)
    k_x, k_p, k_x2 = jax.random.split(key, 3)

    params = make_params(k_p)

    # bf16 MXU operands + EUP approx reciprocal vs an exact-f32 reference:
    # expected error is O(1e-3); tolerance gives a comfortable margin.
    TOL = 2e-2

    # Toy shape for the MSA block: (B, S, E) = (2, 8, 48).
    B, S, E = 2, 8, EMBED_DIM
    x = jax.random.normal(k_x, (B, S, E), jnp.float32)
    out = jax.block_until_ready(mhsa_block(x, params))
    ref = reference(x, params)
    assert out.shape == (B, S, E)
    assert jnp.allclose(out, ref, atol=TOL, rtol=TOL), "mismatch vs reference (toy)"

    # Real ViT token count (img_size=32, patch=4 -> 64 patches + class token = 65):
    # exercises the sequence-padding / pad-key-mask path (S padded 65 -> 72).
    S2 = 65
    x2 = jax.random.normal(k_x2, (B, S2, E), jnp.float32)
    out2 = jax.block_until_ready(mhsa_block(x2, params))
    ref2 = reference(x2, params)
    assert out2.shape == (B, S2, E)
    assert jnp.allclose(out2, ref2, atol=TOL, rtol=TOL), "mismatch vs reference (S=65)"

    print("KERNEL_OK")
</pallas_src>

<mosaic_0001>
module attributes {stable_mosaic.version = 11 : i64} {
  func.func @_mhsa_kernel(%arg0: i32, %arg1: memref<8x48xf32, #tpu.memory_space<vmem>>, %arg2: memref<1x48xf32, #tpu.memory_space<vmem>>, %arg3: memref<1x48xf32, #tpu.memory_space<vmem>>, %arg4: memref<48x256xbf16, #tpu.memory_space<vmem>>, %arg5: memref<1x256xf32, #tpu.memory_space<vmem>>, %arg6: memref<1x8xf32, #tpu.memory_space<vmem>>, %arg7: memref<4x16x48xbf16, #tpu.memory_space<vmem>>, %arg8: memref<1x48xf32, #tpu.memory_space<vmem>>, %arg9: memref<8x48xf32, #tpu.memory_space<vmem>>) attributes {dimension_semantics = [#tpu.dimension_semantics<parallel>], iteration_bounds = array<i64: 2>, scalar_prefetch = 0 : i64, scratch_operands = 0 : i64, tpu.core_type = #tpu.core_type<tc>, window_params = [{transform_indices = @transform_0, window_bounds = array<i64: 8, 48>}, {pipeline_mode = #tpu.pipeline_mode<synchronous>, transform_indices = @transform_1, window_bounds = array<i64: 1, 48>}, {pipeline_mode = #tpu.pipeline_mode<synchronous>, transform_indices = @transform_2, window_bounds = array<i64: 1, 48>}, {pipeline_mode = #tpu.pipeline_mode<synchronous>, transform_indices = @transform_3, window_bounds = array<i64: 48, 256>}, {pipeline_mode = #tpu.pipeline_mode<synchronous>, transform_indices = @transform_4, window_bounds = array<i64: 1, 256>}, {pipeline_mode = #tpu.pipeline_mode<synchronous>, transform_indices = @transform_5, window_bounds = array<i64: 1, 8>}, {pipeline_mode = #tpu.pipeline_mode<synchronous>, transform_indices = @transform_6, window_bounds = array<i64: 4, 16, 48>}, {pipeline_mode = #tpu.pipeline_mode<synchronous>, transform_indices = @transform_7, window_bounds = array<i64: 1, 48>}, {transform_indices = @transform_8, window_bounds = array<i64: 8, 48>}]} {
    %c0 = arith.constant 0 : index
    %c0_0 = arith.constant 0 : index
    %0 = vector.load %arg1[%c0, %c0_0] : memref<8x48xf32, #tpu.memory_space<vmem>>, vector<8x48xf32>
    %cst = arith.constant dense<0.000000e+00> : vector<8xf32>
    %1 = vector.multi_reduction <add>, %0, %cst [1] : vector<8x48xf32> to vector<8xf32>
    %2 = vector.shape_cast %1 : vector<8xf32> to vector<8x1xf32>
    %cst_1 = arith.constant 4.800000e+01 : f32
    %3 = vector.broadcast %cst_1 : f32 to vector<8x1xf32>
    %4 = arith.divf %2, %3 : vector<8x1xf32>
    %5 = vector.broadcast %4 : vector<8x1xf32> to vector<8x48xf32>
    %6 = arith.subf %0, %5 : vector<8x48xf32>
    %7 = arith.mulf %6, %6 : vector<8x48xf32>
    %cst_2 = arith.constant dense<0.000000e+00> : vector<8xf32>
    %8 = vector.multi_reduction <add>, %7, %cst_2 [1] : vector<8x48xf32> to vector<8xf32>
    %9 = vector.shape_cast %8 : vector<8xf32> to vector<8x1xf32>
    %cst_3 = arith.constant 4.800000e+01 : f32
    %10 = vector.broadcast %cst_3 : f32 to vector<8x1xf32>
    %11 = arith.divf %9, %10 : vector<8x1xf32>
    %12 = vector.broadcast %4 : vector<8x1xf32> to vector<8x48xf32>
    %13 = arith.subf %0, %12 : vector<8x48xf32>
    %cst_4 = arith.constant 9.99999974E-6 : f32
    %14 = vector.broadcast %cst_4 : f32 to vector<8x1xf32>
    %15 = arith.addf %11, %14 : vector<8x1xf32>
    %16 = math.rsqrt %15 : vector<8x1xf32>
    %17 = vector.broadcast %16 : vector<8x1xf32> to vector<8x48xf32>
    %18 = arith.mulf %13, %17 : vector<8x48xf32>
    %c0_5 = arith.constant 0 : index
    %c0_6 = arith.constant 0 : index
    %19 = vector.load %arg2[%c0_5, %c0_6] : memref<1x48xf32, #tpu.memory_space<vmem>>, vector<1x48xf32>
    %20 = vector.broadcast %19 : vector<1x48xf32> to vector<8x48xf32>
    %21 = arith.mulf %18, %20 : vector<8x48xf32>
    %c0_7 = arith.constant 0 : index
    %c0_8 = arith.constant 0 : index
    %22 = vector.load %arg3[%c0_7, %c0_8] : memref<1x48xf32, #tpu.memory_space<vmem>>, vector<1x48xf32>
    %23 = vector.broadcast %22 : vector<1x48xf32> to vector<8x48xf32>
    %24 = arith.addf %21, %23 : vector<8x48xf32>
    %25 = arith.truncf %24 : vector<8x48xf32> to vector<8x48xbf16>
    %c0_9 = arith.constant 0 : index
    %c0_10 = arith.constant 0 : index
    %26 = vector.load %arg4[%c0_9, %c0_10] : memref<48x256xbf16, #tpu.memory_space<vmem>>, vector<48x256xbf16>
    %cst_11 = arith.constant dense<0.000000e+00> : vector<8x256xf32>
    %27 = tpu.matmul %25, %26, %cst_11 {dimension_numbers = #tpu.dot_dimension_numbers<[1], [0], [0], [1], [0, 0, 1, 1], [], []>} : vector<8x48xbf16>, vector<48x256xbf16>, vector<8x256xf32> -> vector<8x256xf32>
    %c0_12 = arith.constant 0 : index
    %c0_13 = arith.constant 0 : index
    %28 = vector.load %arg5[%c0_12, %c0_13] : memref<1x256xf32, #tpu.memory_space<vmem>>, vector<1x256xf32>
    %29 = vector.broadcast %28 : vector<1x256xf32> to vector<8x256xf32>
    %30 = arith.addf %27, %29 : vector<8x256xf32>
    %31 = vector.extract_strided_slice %30 {offsets = [0, 0], sizes = [8, 64], strides = [1, 1]} : vector<8x256xf32> to vector<8x64xf32>
    %32 = vector.extract_strided_slice %30 {offsets = [0, 64], sizes = [8, 64], strides = [1, 1]} : vector<8x256xf32> to vector<8x64xf32>
    %33 = vector.extract_strided_slice %30 {offsets = [0, 128], sizes = [8, 64], strides = [1, 1]} : vector<8x256xf32> to vector<8x64xf32>
    %34 = vector.extract_strided_slice %30 {offsets = [0, 192], sizes = [8, 64], strides = [1, 1]} : vector<8x256xf32> to vector<8x64xf32>
    %35 = vector.shape_cast %31 : vector<8x64xf32> to vector<1x8x64xf32>
    %36 = vector.shape_cast %32 : vector<8x64xf32> to vector<1x8x64xf32>
    %37 = vector.shape_cast %33 : vector<8x64xf32> to vector<1x8x64xf32>
    %38 = vector.shape_cast %34 : vector<8x64xf32> to vector<1x8x64xf32>
    %39 = tpu.concatenate %35, %36, %37, %38 in 0 : vector<1x8x64xf32>, vector<1x8x64xf32>, vector<1x8x64xf32>, vector<1x8x64xf32> -> vector<4x8x64xf32>
    %40 = vector.extract_strided_slice %39 {offsets = [0, 0, 0], sizes = [4, 8, 16], strides = [1, 1, 1]} : vector<4x8x64xf32> to vector<4x8x16xf32>
    %41 = arith.truncf %40 : vector<4x8x16xf32> to vector<4x8x16xbf16>
    %42 = vector.extract_strided_slice %39 {offsets = [0, 0, 16], sizes = [4, 8, 16], strides = [1, 1, 1]} : vector<4x8x64xf32> to vector<4x8x16xf32>
    %43 = arith.truncf %42 : vector<4x8x16xf32> to vector<4x8x16xbf16>
    %44 = vector.extract_strided_slice %39 {offsets = [0, 0, 32], sizes = [4, 8, 16], strides = [1, 1, 1]} : vector<4x8x64xf32> to vector<4x8x16xf32>
    %45 = arith.truncf %44 : vector<4x8x16xf32> to vector<4x8x16xbf16>
    "tpu.trace_start"() <{level = 10 : i32, message = "nsd,ntd->nst"}> : () -> ()
    %cst_14 = arith.constant dense<0.000000e+00> : vector<4x8x8xf32>
    %46 = tpu.matmul %41, %43, %cst_14 {dimension_numbers = #tpu.dot_dimension_numbers<[2], [2], [1], [1], [0, 0, 0, 1, 1, 1], [0], [0]>} : vector<4x8x16xbf16>, vector<4x8x16xbf16>, vector<4x8x8xf32> -> vector<4x8x8xf32>
    "tpu.trace_stop"() : () -> ()
    %c0_15 = arith.constant 0 : index
    %c0_16 = arith.constant 0 : index
    %47 = vector.load %arg6[%c0_15, %c0_16] : memref<1x8xf32, #tpu.memory_space<vmem>>, vector<1x8xf32>
    %48 = vector.shape_cast %47 : vector<1x8xf32> to vector<1x1x8xf32>
    %49 = vector.broadcast %48 : vector<1x1x8xf32> to vector<4x8x8xf32>
    %50 = arith.addf %46, %49 : vector<4x8x8xf32>
    %cst_17 = arith.constant dense<0xFF800000> : vector<4x8xf32>
    %51 = vector.multi_reduction <maximumf>, %50, %cst_17 [2] : vector<4x8x8xf32> to vector<4x8xf32>
    %52 = vector.shape_cast %51 : vector<4x8xf32> to vector<4x8x1xf32>
    %53 = vector.broadcast %52 : vector<4x8x1xf32> to vector<4x8x8xf32>
    %54 = arith.subf %50, %53 : vector<4x8x8xf32>
    %55 = math.exp %54 : vector<4x8x8xf32>
    %cst_18 = arith.constant dense<0.000000e+00> : vector<4x8xf32>
    %56 = vector.multi_reduction <add>, %55, %cst_18 [2] : vector<4x8x8xf32> to vector<4x8xf32>
    %57 = vector.shape_cast %56 : vector<4x8xf32> to vector<4x8x1xf32>
    %58 = tpu.reciprocal %57 {approx = true} : vector<4x8x1xf32> -> vector<4x8x1xf32>
    %59 = vector.broadcast %58 : vector<4x8x1xf32> to vector<4x8x8xf32>
    %60 = arith.mulf %55, %59 : vector<4x8x8xf32>
    %61 = arith.truncf %60 : vector<4x8x8xf32> to vector<4x8x8xbf16>
    "tpu.trace_start"() <{level = 10 : i32, message = "nst,ntd->nsd"}> : () -> ()
    %cst_19 = arith.constant dense<0.000000e+00> : vector<4x8x16xf32>
    %62 = tpu.matmul %61, %45, %cst_19 {dimension_numbers = #tpu.dot_dimension_numbers<[2], [1], [1], [2], [0, 0, 0, 1, 1, 2], [0], [0]>} : vector<4x8x8xbf16>, vector<4x8x16xbf16>, vector<4x8x16xf32> -> vector<4x8x16xf32>
    "tpu.trace_stop"() : () -> ()
    %63 = arith.truncf %62 : vector<4x8x16xf32> to vector<4x8x16xbf16>
    %c0_20 = arith.constant 0 : index
    %c0_21 = arith.constant 0 : index
    %c0_22 = arith.constant 0 : index
    %64 = vector.load %arg7[%c0_20, %c0_21, %c0_22] : memref<4x16x48xbf16, #tpu.memory_space<vmem>>, vector<4x16x48xbf16>
    "tpu.trace_start"() <{level = 10 : i32, message = "hrd,hde->hre"}> : () -> ()
    %cst_23 = arith.constant dense<0.000000e+00> : vector<4x8x48xf32>
    %65 = tpu.matmul %63, %64, %cst_23 {dimension_numbers = #tpu.dot_dimension_numbers<[2], [1], [1], [2], [0, 0, 0, 1, 1, 2], [0], [0]>} : vector<4x8x16xbf16>, vector<4x16x48xbf16>, vector<4x8x48xf32> -> vector<4x8x48xf32>
    "tpu.trace_stop"() : () -> ()
    %66 = vector.extract_strided_slice %65 {offsets = [0, 0, 0], sizes = [1, 8, 48], strides = [1, 1, 1]} : vector<4x8x48xf32> to vector<1x8x48xf32>
    %67 = vector.shape_cast %66 : vector<1x8x48xf32> to vector<8x48xf32>
    %68 = vector.extract_strided_slice %65 {offsets = [1, 0, 0], sizes = [1, 8, 48], strides = [1, 1, 1]} : vector<4x8x48xf32> to vector<1x8x48xf32>
    %69 = vector.shape_cast %68 : vector<1x8x48xf32> to vector<8x48xf32>
    %70 = arith.addf %67, %69 : vector<8x48xf32>
    %71 = vector.extract_strided_slice %65 {offsets = [2, 0, 0], sizes = [1, 8, 48], strides = [1, 1, 1]} : vector<4x8x48xf32> to vector<1x8x48xf32>
    %72 = vector.shape_cast %71 : vector<1x8x48xf32> to vector<8x48xf32>
    %73 = arith.addf %70, %72 : vector<8x48xf32>
    %74 = vector.extract_strided_slice %65 {offsets = [3, 0, 0], sizes = [1, 8, 48], strides = [1, 1, 1]} : vector<4x8x48xf32> to vector<1x8x48xf32>
    %75 = vector.shape_cast %74 : vector<1x8x48xf32> to vector<8x48xf32>
    %76 = arith.addf %73, %75 : vector<8x48xf32>
    %c0_24 = arith.constant 0 : index
    %c0_25 = arith.constant 0 : index
    %77 = vector.load %arg8[%c0_24, %c0_25] : memref<1x48xf32, #tpu.memory_space<vmem>>, vector<1x48xf32>
    %78 = vector.broadcast %77 : vector<1x48xf32> to vector<8x48xf32>
    %79 = arith.addf %76, %78 : vector<8x48xf32>
    %c0_26 = arith.constant 0 : index
    %c0_27 = arith.constant 0 : index
    %80 = vector.load %arg9[%c0_26, %c0_27] : memref<8x48xf32, #tpu.memory_space<vmem>>, vector<8x48xf32>
    tpu.vector_store %arg9[%c0_26, %c0_27], %79 {strides = array<i32>} : memref<8x48xf32, #tpu.memory_space<vmem>>, vector<8x48xf32>,
    return
  }
  func.func @transform_0(%arg0: i32) -> (i32, i32) {
    %c0_i32 = arith.constant 0 : i32
    %c0_i32_0 = arith.constant 0 : i32
    return %arg0, %c0_i32 : i32, i32
  }
  func.func @transform_1(%arg0: i32) -> (i32, i32) {
    %c0_i32 = arith.constant 0 : i32
    %c0_i32_0 = arith.constant 0 : i32
    %c0_i32_1 = arith.constant 0 : i32
    return %c0_i32, %c0_i32_0 : i32, i32
  }
  func.func @transform_2(%arg0: i32) -> (i32, i32) {
    %c0_i32 = arith.constant 0 : i32
    %c0_i32_0 = arith.constant 0 : i32
    %c0_i32_1 = arith.constant 0 : i32
    return %c0_i32, %c0_i32_0 : i32, i32
  }
  func.func @transform_3(%arg0: i32) -> (i32, i32) {
    %c0_i32 = arith.constant 0 : i32
    %c0_i32_0 = arith.constant 0 : i32
    %c0_i32_1 = arith.constant 0 : i32
    return %c0_i32, %c0_i32_0 : i32, i32
  }
  func.func @transform_4(%arg0: i32) -> (i32, i32) {
    %c0_i32 = arith.constant 0 : i32
    %c0_i32_0 = arith.constant 0 : i32
    %c0_i32_1 = arith.constant 0 : i32
    return %c0_i32, %c0_i32_0 : i32, i32
  }
  func.func @transform_5(%arg0: i32) -> (i32, i32) {
    %c0_i32 = arith.constant 0 : i32
    %c0_i32_0 = arith.constant 0 : i32
    %c0_i32_1 = arith.constant 0 : i32
    return %c0_i32, %c0_i32_0 : i32, i32
  }
  func.func @transform_6(%arg0: i32) -> (i32, i32, i32) {
    %c0_i32 = arith.constant 0 : i32
    %c0_i32_0 = arith.constant 0 : i32
    %c0_i32_1 = arith.constant 0 : i32
    %c0_i32_2 = arith.constant 0 : i32
    return %c0_i32, %c0_i32_0, %c0_i32_1 : i32, i32, i32
  }
  func.func @transform_7(%arg0: i32) -> (i32, i32) {
    %c0_i32 = arith.constant 0 : i32
    %c0_i32_0 = arith.constant 0 : i32
    %c0_i32_1 = arith.constant 0 : i32
    return %c0_i32, %c0_i32_0 : i32, i32
  }
  func.func @transform_8(%arg0: i32) -> (i32, i32) {
    %c0_i32 = arith.constant 0 : i32
    %c0_i32_0 = arith.constant 0 : i32
    return %arg0, %c0_i32 : i32, i32
  }
}

</mosaic_0001>

<llo_original>
// kernel: tpu_custom_call.1
$region0: #{tpu_custom_call.1}
  #allocation0 [shape = 'u32[]', space=smem, size = 0x4, offset = 0x4, fixed_abs, tag = 'smem constant byte address 0x4 - core index']
  #allocation1 [shape = 'u32[72,128]{1,0:T(1,128)}', space=vmem, size = 0x9000, scoped, tag = 'internal scratch']
  %s0 = inlined_call_operand.hbm [shape: f32[16,48], index: 0, kind: input, shape index: {}]
  %s1 = inlined_call_operand.hbm [shape: f32[1,48], index: 1, kind: input, shape index: {}]
  %s2 = inlined_call_operand.vmem [shape: f32[1,48], index: 2, kind: input, shape index: {}]
  %s3 = inlined_call_operand.hbm [shape: bf16[48,256], index: 3, kind: input, shape index: {}]
  %s4 = inlined_call_operand.vmem [shape: f32[1,256], index: 4, kind: input, shape index: {}]
  %s5 = inlined_call_operand.vmem [shape: f32[1,8], index: 5, kind: input, shape index: {}]
  %s6 = inlined_call_operand.hbm [shape: bf16[4,16,48], index: 6, kind: input, shape index: {}]
  %s7 = inlined_call_operand.vmem [shape: f32[1,48], index: 7, kind: input, shape index: {}]
  %s8 = inlined_call_operand.hbm [shape: f32[16,48], index: 8, kind: output, shape index: {}]
  %s9 = sld [smem:[#allocation0]]
  $region81: #{tpu_custom_call.1} parent=0
    _
  %s11 = ssub.s32 1, %s9
  %s12 = scalar_select 0, %s11, %s9
  $region1: #{tpu_custom_call.1} parent=0
    #allocation2 [shape = 'u8[8192]{0}', space=vmem, size = 0x2000, scoped, tag = 'input window, operand 0']
    #allocation3 [shape = 's32[2]{0}', space=sflag, size = 0x8, scoped, tag = 'scoped memory for tpu_custom_call.1']
    #allocation4 [shape = 's32[2]{0}', space=sflag, size = 0x8, scoped, tag = 'scoped memory for tpu_custom_call.1']
    #allocation5 [shape = 'u8[512]{0}', space=vmem, size = 0x400, scoped, tag = 'input window, operand 1, single buffered']
    #allocation6 [shape = 's32[1]{0}', space=sflag, size = 0x4, scoped, tag = 'scoped memory for tpu_custom_call.1']
    #allocation7 [shape = 'u8[24576]{0}', space=vmem, size = 0x6000, scoped, tag = 'input window, operand 3, single buffered']
    #allocation8 [shape = 'u8[16384]{0}', space=vmem, size = 0x4000, scoped, tag = 'input window, operand 6, single buffered']
    #allocation9 [shape = 's32[1]{0}', space=sflag, size = 0x4, scoped, tag = 'scoped memory for tpu_custom_call.1']
    #allocation10 [shape = 'u8[8192]{0}', space=vmem, size = 0x2000, scoped, tag = 'output window, operand 0']
    %13 = vsyncpa [#allocation3], 0
    %s14 = scalar_lea.sflag [#allocation3], 1
    %15 = vsyncpa %s14, 0
    %16 = vsyncpa [#allocation6], 0
    %17 = vsyncpa [#allocation9], 0
    %18 = vsyncpa [#allocation4], 0
    %s19 = scalar_lea.sflag [#allocation4], 1
    %20 = vsyncpa %s19, 0
    loop: start=0, step=1, limit=4
    $region2: #{tpu_custom_call.1} parent=1 // loop_pre_header
      _
    $region3: #{tpu_custom_call.1} parent=1 // loop_header
      %s22 = sphi 0, %s26
      %p23 = scmp.ge.s32.totalorder %s22, 4
      %s32 = sphi 0, %s34
      %s35 = sphi 0, %s32
      %s36 = sphi 0, %s35
      %s52 = sphi 0, %s36
      %s56 = sphi 0, %s56
      %s58 = sphi 0, %s56
      %s59 = sphi 0, %s58
      %s73 = sphi 0, %s59
      %s77 = sphi 0, %s77
      %s79 = sphi 0, %s77
      %s80 = sphi 0, %s79
      %s94 = sphi 0, %s80
      %s98 = sphi 0, %s98
      %s100 = sphi 0, %s98
      %s101 = sphi 0, %s100
      %s115 = sphi 0, %s101
      %s119 = sphi 0, %s119
      %s121 = sphi 0, %s119
      %s122 = sphi 0, %s121
      %s136 = sphi 0, %s122
      %s140 = sphi 0, %s140
      %s142 = sphi 0, %s140
      %s143 = sphi 0, %s142
      %s157 = sphi 0, %s143
      %s161 = sphi 0, %s161
      %s163 = sphi 0, %s161
      %s164 = sphi 0, %s163
      %s178 = sphi 0, %s164
      %s182 = sphi 0, %s182
      %s184 = sphi 0, %s182
      %s185 = sphi 0, %s184
      %s199 = sphi 0, %s185
      %s205 = sphi 0, %s207
      %s208 = sphi 0, %s205
      %s209 = sphi 0, %s208
      %s225 = sphi 0, %s209
    $region4: #{tpu_custom_call.1} parent=1 // loop_header_branch
      %25 = sbr.rel (%p23) target = $region8
    $region5: #{tpu_custom_call.1} parent=1 // loop_body
      %s27 = ssub.s32 %s22, 1
      %s28 = ssub.s32 %s22, 2
      %s29 = sadd.s32 %s22, 1
      %s30 = ssub.s32 %s22, %s29
      %p31 = scmp.eq.s32.totalorder %s30, 0
      %s33 = sadd.s32 %s32, 1
      %s34 = scalar_select %p31, %s32, %s33
      %p37 = pneg %p31
      %p38 = scmp.eq.s32.totalorder %s22, 1
      %p39 = por %p37, %p38
      %p40 = scmp.ne.s32.totalorder %s32, %s35
      %p41 = scmp.eq.s32.totalorder %s22, 0
      %p42 = por %p40, %p41
      %p43 = scmp.ne.s32.totalorder %s32, %s35
      %p44 = scmp.eq.s32.totalorder %s27, 1
      %p45 = por %p43, %p44
      %p46 = scmp.ne.s32.totalorder %s35, %s36
      %p47 = scmp.eq.s32.totalorder %s27, 0
      %p48 = por %p46, %p47
      %p49 = scmp.ne.s32.totalorder %s35, %s36
      %p50 = scmp.eq.s32.totalorder %s28, 1
      %p51 = por %p49, %p50
      %p53 = scmp.ne.s32.totalorder %s36, %s52
      %p54 = scmp.eq.s32.totalorder %s28, 0
      %p55 = por %p53, %p54
      %s57 = sadd.s32 %s56, 1
      %p60 = scmp.eq.s32.totalorder %s22, 1
      %p61 = scmp.ne.s32.totalorder %s56, %s58
      %p62 = scmp.eq.s32.totalorder %s22, 0
      %p63 = por %p61, %p62
      %p64 = scmp.ne.s32.totalorder %s56, %s58
      %p65 = scmp.eq.s32.totalorder %s27, 1
      %p66 = por %p64, %p65
      %p67 = scmp.ne.s32.totalorder %s58, %s59
      %p68 = scmp.eq.s32.totalorder %s27, 0
      %p69 = por %p67, %p68
      %p70 = scmp.ne.s32.totalorder %s58, %s59
      %p71 = scmp.eq.s32.totalorder %s28, 1
      %p72 = por %p70, %p71
      %p74 = scmp.ne.s32.totalorder %s59, %s73
      %p75 = scmp.eq.s32.totalorder %s28, 0
      %p76 = por %p74, %p75
      %s78 = sadd.s32 %s77, 1
      %p81 = scmp.eq.s32.totalorder %s22, 1
      %p82 = scmp.ne.s32.totalorder %s77, %s79
      %p83 = scmp.eq.s32.totalorder %s22, 0
      %p84 = por %p82, %p83
      %p85 = scmp.ne.s32.totalorder %s77, %s79
      %p86 = scmp.eq.s32.totalorder %s27, 1
      %p87 = por %p85, %p86
      %p88 = scmp.ne.s32.totalorder %s79, %s80
      %p89 = scmp.eq.s32.totalorder %s27, 0
      %p90 = por %p88, %p89
      %p91 = scmp.ne.s32.totalorder %s79, %s80
      %p92 = scmp.eq.s32.totalorder %s28, 1
      %p93 = por %p91, %p92
      %p95 = scmp.ne.s32.totalorder %s80, %s94
      %p96 = scmp.eq.s32.totalorder %s28, 0
      %p97 = por %p95, %p96
      %s99 = sadd.s32 %s98, 1
      %p102 = scmp.eq.s32.totalorder %s22, 1
      %p103 = scmp.ne.s32.totalorder %s98, %s100
      %p104 = scmp.eq.s32.totalorder %s22, 0
      %p105 = por %p103, %p104
      %p106 = scmp.ne.s32.totalorder %s98, %s100
      %p107 = scmp.eq.s32.totalorder %s27, 1
      %p108 = por %p106, %p107
      %p109 = scmp.ne.s32.totalorder %s100, %s101
      %p110 = scmp.eq.s32.totalorder %s27, 0
      %p111 = por %p109, %p110
      %p112 = scmp.ne.s32.totalorder %s100, %s101
      %p113 = scmp.eq.s32.totalorder %s28, 1
      %p114 = por %p112, %p113
      %p116 = scmp.ne.s32.totalorder %s101, %s115
      %p117 = scmp.eq.s32.totalorder %s28, 0
      %p118 = por %p116, %p117
      %s120 = sadd.s32 %s119, 1
      %p123 = scmp.eq.s32.totalorder %s22, 1
      %p124 = scmp.ne.s32.totalorder %s119, %s121
      %p125 = scmp.eq.s32.totalorder %s22, 0
      %p126 = por %p124, %p125
      %p127 = scmp.ne.s32.totalorder %s119, %s121
      %p128 = scmp.eq.s32.totalorder %s27, 1
      %p129 = por %p127, %p128
      %p130 = scmp.ne.s32.totalorder %s121, %s122
      %p131 = scmp.eq.s32.totalorder %s27, 0
      %p132 = por %p130, %p131
      %p133 = scmp.ne.s32.totalorder %s121, %s122
      %p134 = scmp.eq.s32.totalorder %s28, 1
      %p135 = por %p133, %p134
      %p137 = scmp.ne.s32.totalorder %s122, %s136
      %p138 = scmp.eq.s32.totalorder %s28, 0
      %p139 = por %p137, %p138
      %s141 = sadd.s32 %s140, 1
      %p144 = scmp.eq.s32.totalorder %s22, 1
      %p145 = scmp.ne.s32.totalorder %s140, %s142
      %p146 = scmp.eq.s32.totalorder %s22, 0
      %p147 = por %p145, %p146
      %p148 = scmp.ne.s32.totalorder %s140, %s142
      %p149 = scmp.eq.s32.totalorder %s27, 1
      %p150 = por %p148, %p149
      %p151 = scmp.ne.s32.totalorder %s142, %s143
      %p152 = scmp.eq.s32.totalorder %s27, 0
      %p153 = por %p151, %p152
      %p154 = scmp.ne.s32.totalorder %s142, %s143
      %p155 = scmp.eq.s32.totalorder %s28, 1
      %p156 = por %p154, %p155
      %p158 = scmp.ne.s32.totalorder %s143, %s157
      %p159 = scmp.eq.s32.totalorder %s28, 0
      %p160 = por %p158, %p159
      %s162 = sadd.s32 %s161, 1
      %p165 = scmp.eq.s32.totalorder %s22, 1
      %p166 = scmp.ne.s32.totalorder %s161, %s163
      %p167 = scmp.eq.s32.totalorder %s22, 0
      %p168 = por %p166, %p167
      %p169 = scmp.ne.s32.totalorder %s161, %s163
      %p170 = scmp.eq.s32.totalorder %s27, 1
      %p171 = por %p169, %p170
      %p172 = scmp.ne.s32.totalorder %s163, %s164
      %p173 = scmp.eq.s32.totalorder %s27, 0
      %p174 = por %p172, %p173
      %p175 = scmp.ne.s32.totalorder %s163, %s164
      %p176 = scmp.eq.s32.totalorder %s28, 1
      %p177 = por %p175, %p176
      %p179 = scmp.ne.s32.totalorder %s164, %s178
      %p180 = scmp.eq.s32.totalorder %s28, 0
      %p181 = por %p179, %p180
      %s183 = sadd.s32 %s182, 1
      %p186 = scmp.eq.s32.totalorder %s22, 1
      %p187 = scmp.ne.s32.totalorder %s182, %s184
      %p188 = scmp.eq.s32.totalorder %s22, 0
      %p189 = por %p187, %p188
      %p190 = scmp.ne.s32.totalorder %s182, %s184
      %p191 = scmp.eq.s32.totalorder %s27, 1
      %p192 = por %p190, %p191
      %p193 = scmp.ne.s32.totalorder %s184, %s185
      %p194 = scmp.eq.s32.totalorder %s27, 0
      %p195 = por %p193, %p194
      %p196 = scmp.ne.s32.totalorder %s184, %s185
      %p197 = scmp.eq.s32.totalorder %s28, 1
      %p198 = por %p196, %p197
      %p200 = scmp.ne.s32.totalorder %s185, %s199
      %p201 = scmp.eq.s32.totalorder %s28, 0
      %p202 = por %p200, %p201
      %s203 = ssub.s32 %s22, %s29
      %p204 = scmp.eq.s32.totalorder %s203, 0
      %s206 = sadd.s32 %s205, 1
      %s207 = scalar_select %p204, %s205, %s206
      %p210 = pneg %p204
      %p211 = scmp.eq.s32.totalorder %s22, 1
      %p212 = por %p210, %p211
      %p213 = scmp.ne.s32.totalorder %s205, %s208
      %p214 = scmp.eq.s32.totalorder %s22, 0
      %p215 = por %p213, %p214
      %p216 = scmp.ne.s32.totalorder %s205, %s208
      %p217 = scmp.eq.s32.totalorder %s27, 1
      %p218 = por %p216, %p217
      %p219 = scmp.ne.s32.totalorder %s208, %s209
      %p220 = scmp.eq.s32.totalorder %s27, 0
      %p221 = por %p219, %p220
      %p222 = scmp.ne.s32.totalorder %s208, %s209
      %p223 = scmp.eq.s32.totalorder %s28, 1
      %p224 = por %p222, %p223
      %p226 = scmp.ne.s32.totalorder %s209, %s225
      %p227 = scmp.eq.s32.totalorder %s28, 0
      %p228 = por %p226, %p227
      %p229 = scmp.le.s32.totalorder 1, %s22
      %p230 = scmp.lt.s32.totalorder %s22, 3
      %p231 = pnand %p229, %p230
      %p232 = pneg %p231
      // Predicated region
      $region9: #{tpu_custom_call.1} parent=5 // pred_check
        _
      $region10: #{tpu_custom_call.1} parent=5 // pred_check_branch
        %234 = sbr.rel (%p231) target = $region12
      $region11: #{tpu_custom_call.1} parent=5 // pred_region
        %s235 = ssub.s32 %s22, 1
        // Predicated region
        $region13: #{tpu_custom_call.1} parent=11 // pred_check
          %p236 = pneg %p69
        $region14: #{tpu_custom_call.1} parent=11 // pred_check_branch
          %238 = sbr.rel (%p236) target = $region16
        $region15: #{tpu_custom_call.1} parent=11 // pred_region
          %240 = vsyncadd [#allocation6], 0
          %s242 = sshll.u32 %s1, 4
          %s243 = int_to_ptr.hbm [resolvable:$true] %s242
          %s244 = sshll.u32 [#allocation5], 4
          %s245 = int_to_ptr.vmem [resolvable:$true] %s244
          %247 = dma.hbm_to_vmem [thread:$0]  %s243, 16, %s245, [#allocation6]
        $region16: #{tpu_custom_call.1} parent=11 // pred_fallthru
          _
        // Predicated region
        $region17: #{tpu_custom_call.1} parent=11 // pred_check
          %p248 = pneg %p90
        $region18: #{tpu_custom_call.1} parent=11 // pred_check_branch
          %250 = sbr.rel (%p248) target = $region20
        $region19: #{tpu_custom_call.1} parent=11 // pred_region
          _
        $region20: #{tpu_custom_call.1} parent=11 // pred_fallthru
          _
        // Predicated region
        $region21: #{tpu_custom_call.1} parent=11 // pred_check
          %p251 = pneg %p111
        $region22: #{tpu_custom_call.1} parent=11 // pred_check_branch
          %253 = sbr.rel (%p251) target = $region24
        $region23: #{tpu_custom_call.1} parent=11 // pred_region
          %255 = vsyncadd [#allocation6], 0
          %s256 = sshll.u32 %s3, 4
          %s257 = int_to_ptr.hbm [resolvable:$true] %s256
          %s258 = sshll.u32 [#allocation7], 4
          %s259 = int_to_ptr.vmem [resolvable:$true] %s258
          %264 = dma.hbm_to_vmem [thread:$0]  %s257, 768, %s259, [#allocation6], 128, 128, 8
        $region24: #{tpu_custom_call.1} parent=11 // pred_fallthru
          _
        // Predicated region
        $region25: #{tpu_custom_call.1} parent=11 // pred_check
          %p265 = pneg %p132
        $region26: #{tpu_custom_call.1} parent=11 // pred_check_branch
          %267 = sbr.rel (%p265) target = $region28
        $region27: #{tpu_custom_call.1} parent=11 // pred_region
          _
        $region28: #{tpu_custom_call.1} parent=11 // pred_fallthru
          _
        // Predicated region
        $region29: #{tpu_custom_call.1} parent=11 // pred_check
          %p268 = pneg %p153
        $region30: #{tpu_custom_call.1} parent=11 // pred_check_branch
          %270 = sbr.rel (%p268) target = $region32
        $region31: #{tpu_custom_call.1} parent=11 // pred_region
          _
        $region32: #{tpu_custom_call.1} parent=11 // pred_fallthru
          _
        // Predicated region
        $region33: #{tpu_custom_call.1} parent=11 // pred_check
          %p271 = pneg %p174
        $region34: #{tpu_custom_call.1} parent=11 // pred_check_branch
          %273 = sbr.rel (%p271) target = $region36
        $region35: #{tpu_custom_call.1} parent=11 // pred_region
          %275 = vsyncadd [#allocation9], 0
          %s276 = sshll.u32 %s6, 4
          %s277 = int_to_ptr.hbm [resolvable:$true] %s276
          %s278 = sshll.u32 [#allocation8], 4
          %s279 = int_to_ptr.vmem [resolvable:$true] %s278
          %284 = dma.hbm_to_vmem [thread:$0]  %s277, 512, %s279, [#allocation9], 64, 64, 4
        $region36: #{tpu_custom_call.1} parent=11 // pred_fallthru
          _
        // Predicated region
        $region37: #{tpu_custom_call.1} parent=11 // pred_check
          %p285 = pneg %p195
        $region38: #{tpu_custom_call.1} parent=11 // pred_check_branch
          %287 = sbr.rel (%p285) target = $region40
        $region39: #{tpu_custom_call.1} parent=11 // pred_region
          _
        $region40: #{tpu_custom_call.1} parent=11 // pred_fallthru
          _
      $region12: #{tpu_custom_call.1} parent=5 // pred_fallthru
        _
      %p288 = scmp.lt.s32.totalorder %s22, 2
      // Predicated region
      $region41: #{tpu_custom_call.1} parent=5 // pred_check
        %p289 = pneg %p288
      $region42: #{tpu_custom_call.1} parent=5 // pred_check_branch
        %291 = sbr.rel (%p289) target = $region44
      $region43: #{tpu_custom_call.1} parent=5 // pred_region
        // Predicated region
        $region45: #{tpu_custom_call.1} parent=43 // pred_check
          %p292 = pneg %p42
        $region46: #{tpu_custom_call.1} parent=43 // pred_check_branch
          %294 = sbr.rel (%p292) target = $region48
        $region47: #{tpu_custom_call.1} parent=43 // pred_region
          %s295 = sand.u32 %s32, 1
          %s296 = scalar_lea.sflag [#allocation3], %s295
          %s297 = sand.u32 %s32, 1
          %s298 = smul.addr %s297, 8
          %s299 = scalar_lea.vmem [#allocation2], %s298
          %301 = vsyncadd %s296, 0
          %s302 = smul.addr %s22, 8
          %s303 = scalar_lea.hbm %s0, %s302
          %s305 = sshll.u32 %s303, 4
          %s306 = int_to_ptr.hbm [resolvable:$true] %s305
          %s307 = sshll.u32 %s299, 4
          %s308 = int_to_ptr.vmem [resolvable:$true] %s307
          %310 = dma.hbm_to_vmem [thread:$0]  %s306, 128, %s308, %s296
        $region48: #{tpu_custom_call.1} parent=43 // pred_fallthru
          _
      $region44: #{tpu_custom_call.1} parent=5 // pred_fallthru
        _
      %p311 = scmp.le.s32.totalorder 1, %s22
      %p312 = scmp.lt.s32.totalorder %s22, 3
      %p313 = pnand %p311, %p312
      %p314 = pneg %p313
      // Predicated region
      $region49: #{tpu_custom_call.1} parent=5 // pred_check
        _
      $region50: #{tpu_custom_call.1} parent=5 // pred_check_branch
        %316 = sbr.rel (%p313) target = $region52
      $region51: #{tpu_custom_call.1} parent=5 // pred_region
        %s317 = ssub.s32 %s22, 1
        %s318 = sand.u32 %s35, 1
        %s319 = scalar_lea.sflag [#allocation3], %s318
        %s320 = sand.u32 %s35, 1
        %s321 = smul.addr %s320, 8
        %s322 = scalar_lea.vmem [#allocation2], %s321
        // Predicated region
        $region53: #{tpu_custom_call.1} parent=51 // pred_check
          %p323 = pneg %p48
        $region54: #{tpu_custom_call.1} parent=51 // pred_check_branch
          %325 = sbr.rel (%p323) target = $region56
        $region55: #{tpu_custom_call.1} parent=51 // pred_region
          %327 = dma.done %s319, 128
        $region56: #{tpu_custom_call.1} parent=51 // pred_fallthru
          _
        // Predicated region
        $region57: #{tpu_custom_call.1} parent=51 // pred_check
          %p328 = pneg %p69
        $region58: #{tpu_custom_call.1} parent=51 // pred_check_branch
          %330 = sbr.rel (%p328) target = $region60
        $region59: #{tpu_custom_call.1} parent=51 // pred_region
          %332 = dma.done [#allocation6], 16
        $region60: #{tpu_custom_call.1} parent=51 // pred_fallthru
          _
        // Predicated region
        $region61: #{tpu_custom_call.1} parent=51 // pred_check
          %p333 = pneg %p111
        $region62: #{tpu_custom_call.1} parent=51 // pred_check_branch
          %335 = sbr.rel (%p333) target = $region64
        $region63: #{tpu_custom_call.1} parent=51 // pred_region
          %337 = dma.done [#allocation6], 768
        $region64: #{tpu_custom_call.1} parent=51 // pred_fallthru
          _
        // Predicated region
        $region65: #{tpu_custom_call.1} parent=51 // pred_check
          %p338 = pneg %p174
        $region66: #{tpu_custom_call.1} parent=51 // pred_check_branch
          %340 = sbr.rel (%p338) target = $region68
        $region67: #{tpu_custom_call.1} parent=51 // pred_region
          %342 = dma.done [#allocation9], 512
        $region68: #{tpu_custom_call.1} parent=51 // pred_fallthru
          _
        %s343 = sand.u32 %s35, 1
        %s344 = scalar_lea.sflag [#allocation3], %s343
        %s345 = sand.u32 %s35, 1
        %s346 = smul.addr %s345, 8
        %s347 = scalar_lea.vmem [#allocation2], %s346
        %p348 = pneg %p48
        %p349 = pneg %p45
        %p350 = pneg %p69
        %p351 = pneg %p66
        %p352 = pneg %p90
        %p353 = pneg %p87
        %p354 = pneg %p111
        %p355 = pneg %p108
        %p356 = pneg %p132
        %p357 = pneg %p129
        %p358 = pneg %p153
        %p359 = pneg %p150
        %p360 = pneg %p174
        %p361 = pneg %p171
        %p362 = pneg %p195
        %p363 = pneg %p192
        %p364 = pneg %p221
        %p365 = pneg %p218
        %s366 = sand.u32 %s208, 1
        %s367 = scalar_lea.sflag [#allocation4], %s366
        %s368 = sand.u32 %s208, 1
        %s369 = smul.addr %s368, 8
        %s370 = scalar_lea.vmem [#allocation10], %s369
        %v372 = vld [vmem:[%s322] sm:$0xff]
        %vm373 = vcmask 392192
        %v374 = vsel %vm373, %v372, 0.0
        %375 = vadd.xlane.f32.xlu0 %v374
        %v376 = vpop.xlane.xlu0 %375
        %v377 = vrcp.pop 48.0
        %v378 = vmul.f32 48.0, %v377
        %v379 = vsub.f32 1.0, %v378
        %v380 = vmul.f32 %v377, %v379
        %v381 = vadd.f32 %v377, %v380
        %vm382 = vweird.f32 %v377
        %v383 = vsel %vm382, %v377, %v381
        %v384 = vmul.f32 %v376, %v383
        %v385 = vsub.f32 %v372, %v384
        %v386 = vmul.f32 %v385, %v385
        %v387 = vsel %vm373, %v386, 0.0
        %388 = vadd.xlane.f32.xlu0 %v387
        %v389 = vpop.xlane.xlu0 %388
        %v390 = vmul.f32 %v389, %v383
        %v391 = vadd.f32 %v390, 1e-05
        %v392 = vrsqrt.pop %v391
        %v393 = vmul.f32 %v392, %v391
        %v394 = vmul.f32 %v393, %v392
        %v395 = vmul.f32 0.5, %v394
        %v396 = vsub.f32 1.5, %v395
        %v397 = vmul.f32 %v392, %v396
        %vm398 = vweird.f32 %v391
        %vm399 = vweird.f32 %v392
        %vm400 = vmor %vm398, %vm399
        %v401 = vsel %vm400, %v392, %v397
        %v402 = vmul.f32 %v385, %v401
        %v403 = vld [vmem:[#allocation5] sm:$0x1]
        %v405 = vperm.slane %v403, 0
        %v407 = vmul.f32 %v402, %v405
        %v408 = vld [vmem:[%s2] sm:$0x1]
        %v410 = vperm.slane %v408, 0
        %v412 = vadd.f32 %v407, %v410
        %v413 = vpack.c.bf16 %v412, %v412
        %v414 = vld [vmem:[#allocation7] sm:$0xff]
        %v415 = vld [vmem:[#allocation7 + $0x8] sm:$0xff]
        %v416 = vld [vmem:[#allocation7 + $0x10] sm:$0xff]
        %v417 = vld [vmem:[#allocation7 + $0x18] sm:$0xff]
        %v418 = vld [vmem:[#allocation7 + $0x20] sm:$0xff]
        %v419 = vld [vmem:[#allocation7 + $0x28] sm:$0xff]
        %v420 = vld [vmem:[%s4] sm:$0x3]
        %v422 = vperm.slane %v420, 0
        %v423 = vperm.slane %v420, 1
        %v432 = vunpack.c.l.b16 %v414
        %v433 = vunpack.c.h.b16 %v414
        %v434 = vunpack.c.l.b16 %v415
        %v435 = vunpack.c.h.b16 %v415
        %v436 = vunpack.c.l.b16 %v416
        %v437 = vunpack.c.h.b16 %v416
        %v438 = vunpack.c.l.b16 %v417
        %v439 = vunpack.c.h.b16 %v417
        %v440 = vunpack.c.l.b16 %v418
        %v441 = vunpack.c.h.b16 %v418
        %v442 = vunpack.c.l.b16 %v419
        %v443 = vunpack.c.h.b16 %v419
        %v444 = vpack.c.b16 %v434, %v432
        %v445 = vpack.c.b16 %v435, %v433
        %v446 = vpack.c.b16 %v438, %v436
        %v447 = vpack.c.b16 %v439, %v437
        %v448 = vpack.c.b16 %v442, %v440
        %v449 = vpack.c.b16 %v443, %v441
        %v457 = vsel %vm373, %v413, 0
        %459 = vmatpush.bf16.msra.mxu0 0
        %460 = vmatpush.bf16.msra.mxu0 0
        %461 = vmatpush.bf16.msra.mxu0 0
        %462 = vmatpush.bf16.msra.mxu0 0
        %463 = vmatpush.bf16.msra.mxu0 0
        %464 = vmatpush.bf16.msra.mxu0 %v448
        %465 = vmatpush.bf16.msra.mxu0 %v446
        %466 = vmatpush.bf16.msra.mxu0 %v444
        %467 = vmatmul.bf16.gmra.mxu0 %v457
        %v468 = vpop.f32.mrf.mxu0
        %v469 = vadd.f32 %v422, %v468
        %v470 = vpop.f32.mrf.mxu0
        %471 = vdwg.mxu0
        %472 = vmatpush.bf16.msra.mxu0 0
        %473 = vmatpush.bf16.msra.mxu0 0
        %474 = vmatpush.bf16.msra.mxu0 0
        %475 = vmatpush.bf16.msra.mxu0 0
        %476 = vmatpush.bf16.msra.mxu0 0
        %477 = vmatpush.bf16.msra.mxu0 %v449
        %478 = vmatpush.bf16.msra.mxu0 %v447
        %479 = vmatpush.bf16.msra.mxu0 %v445
        %480 = vmatmul.bf16.gmra.mxu0 %v457
        %v481 = vpop.f32.mrf.mxu0
        %v482 = vadd.f32 %v423, %v481
        %v483 = vpop.f32.mrf.mxu0
        %484 = vdwg.mxu0
        %486 = vrot.lane.b32.xlu0 %v469, 64
        %v487 = vpop.permute.xlu0 %486
        %490 = vrot.lane.b32.xlu0 %v482, 64
        %v491 = vpop.permute.xlu0 %490
        %v493 = vpack.c.bf16 %v469, %v469
        %v494 = vpack.c.bf16 %v487, %v487
        %v495 = vpack.c.bf16 %v482, %v482
        %v496 = vpack.c.bf16 %v491, %v491
        %v497 = vld [vmem:[%s5] sm:$0x1]
        %v499 = vperm.slane %v497, 0
        %v502 = vunpack.c.l.b16 %v493
        %v503 = vpack.c.b16 %v502, %v502
        %504 = vrot.lane.b32.xlu0 %v503, 112
        %v505 = vpop.permute.xlu0 %504
        %vm506 = vcmask 130048
        %v508 = vsel %vm506, %v493, 0
        %v511 = vsel %vm506, %v505, 0
        %513 = vmatpush.bf16.xpose.msra.mxu0 0
        %514 = vmatpush.bf16.xpose.msra.mxu0 0
        %515 = vmatpush.bf16.xpose.msra.mxu0 0
        %516 = vmatpush.bf16.xpose.msra.mxu0 0
        %517 = vmatpush.bf16.xpose.msra.mxu0 0
        %518 = vmatpush.bf16.xpose.msra.mxu0 0
        %519 = vmatpush.bf16.xpose.msra.mxu0 0
        %520 = vmatpush.bf16.xpose.msra.mxu0 %v511
        %521 = vmatmul.bf16.gmra.mxu0 %v508
        %v522 = vpop.f32.mrf.mxu0
        %v523 = vadd.f32 %v499, %v522
        %v524 = vpop.f32.mrf.mxu0
        %525 = vdwg.mxu0
        %v527 = vunpack.c.l.b16 %v494
        %v528 = vpack.c.b16 %v527, %v527
        %529 = vrot.lane.b32.xlu0 %v528, 112
        %v530 = vpop.permute.xlu0 %529
        %v532 = vsel %vm506, %v494, 0
        %v535 = vsel %vm506, %v530, 0
        %537 = vmatpush.bf16.xpose.msra.mxu0 0
        %538 = vmatpush.bf16.xpose.msra.mxu0 0
        %539 = vmatpush.bf16.xpose.msra.mxu0 0
        %540 = vmatpush.bf16.xpose.msra.mxu0 0
        %541 = vmatpush.bf16.xpose.msra.mxu0 0
        %542 = vmatpush.bf16.xpose.msra.mxu0 0
        %543 = vmatpush.bf16.xpose.msra.mxu0 0
        %544 = vmatpush.bf16.xpose.msra.mxu0 %v535
        %545 = vmatmul.bf16.gmra.mxu0 %v532
        %v546 = vpop.f32.mrf.mxu0
        %v547 = vadd.f32 %v499, %v546
        %v548 = vpop.f32.mrf.mxu0
        %549 = vdwg.mxu0
        %v551 = vunpack.c.l.b16 %v495
        %v552 = vpack.c.b16 %v551, %v551
        %553 = vrot.lane.b32.xlu0 %v552, 112
        %v554 = vpop.permute.xlu0 %553
        %v556 = vsel %vm506, %v495, 0
        %v559 = vsel %vm506, %v554, 0
        %561 = vmatpush.bf16.xpose.msra.mxu0 0
        %562 = vmatpush.bf16.xpose.msra.mxu0 0
        %563 = vmatpush.bf16.xpose.msra.mxu0 0
        %564 = vmatpush.bf16.xpose.msra.mxu0 0
        %565 = vmatpush.bf16.xpose.msra.mxu0 0
        %566 = vmatpush.bf16.xpose.msra.mxu0 0
        %567 = vmatpush.bf16.xpose.msra.mxu0 0
        %568 = vmatpush.bf16.xpose.msra.mxu0 %v559
        %569 = vmatmul.bf16.gmra.mxu0 %v556
        %v570 = vpop.f32.mrf.mxu0
        %v571 = vadd.f32 %v499, %v570
        %v572 = vpop.f32.mrf.mxu0
        %573 = vdwg.mxu0
        %v575 = vunpack.c.l.b16 %v496
        %v576 = vpack.c.b16 %v575, %v575
        %577 = vrot.lane.b32.xlu0 %v576, 112
        %v578 = vpop.permute.xlu0 %577
        %v580 = vsel %vm506, %v496, 0
        %v583 = vsel %vm506, %v578, 0
        %585 = vmatpush.bf16.xpose.msra.mxu0 0
        %586 = vmatpush.bf16.xpose.msra.mxu0 0
        %587 = vmatpush.bf16.xpose.msra.mxu0 0
        %588 = vmatpush.bf16.xpose.msra.mxu0 0
        %589 = vmatpush.bf16.xpose.msra.mxu0 0
        %590 = vmatpush.bf16.xpose.msra.mxu0 0
        %591 = vmatpush.bf16.xpose.msra.mxu0 0
        %592 = vmatpush.bf16.xpose.msra.mxu0 %v583
        %593 = vmatmul.bf16.gmra.mxu0 %v580
        %v594 = vpop.f32.mrf.mxu0
        %v595 = vadd.f32 %v499, %v594
        %v596 = vpop.f32.mrf.mxu0
        %597 = vdwg.mxu0
        %vm598 = vcmask 64512
        %v599 = vsel %vm598, %v523, -inf
        %600 = vmax.xlane.f32.xlu0 %v599
        %v601 = vpop.xlane.xlu0 %600
        %v602 = vsel %vm598, %v547, -inf
        %603 = vmax.xlane.f32.xlu0 %v602
        %v604 = vpop.xlane.xlu0 %603
        %v605 = vsel %vm598, %v571, -inf
        %606 = vmax.xlane.f32.xlu0 %v605
        %v607 = vpop.xlane.xlu0 %606
        %v608 = vsel %vm598, %v595, -inf
        %609 = vmax.xlane.f32.xlu0 %v608
        %v610 = vpop.xlane.xlu0 %609
        %v611 = vsub.f32 %v523, %v601
        %v612 = vsub.f32 %v547, %v604
        %v613 = vsub.f32 %v571, %v607
        %v614 = vsub.f32 %v595, %v610
        %v615 = vmul.f32 %v611, 1.442695
        %v616 = vpow.pop %v615
        %v617 = vmul.f32 %v612, 1.442695
        %v618 = vpow.pop %v617
        %v619 = vmul.f32 %v613, 1.442695
        %v620 = vpow.pop %v619
        %v621 = vmul.f32 %v614, 1.442695
        %v622 = vpow.pop %v621
        %v623 = vsel %vm598, %v616, 0.0
        %624 = vadd.xlane.f32.xlu0 %v623
        %v625 = vpop.xlane.xlu0 %624
        %v626 = vsel %vm598, %v618, 0.0
        %627 = vadd.xlane.f32.xlu0 %v626
        %v628 = vpop.xlane.xlu0 %627
        %v629 = vsel %vm598, %v620, 0.0
        %630 = vadd.xlane.f32.xlu0 %v629
        %v631 = vpop.xlane.xlu0 %630
        %v632 = vsel %vm598, %v622, 0.0
        %633 = vadd.xlane.f32.xlu0 %v632
        %v634 = vpop.xlane.xlu0 %633
        %v635 = vrcp.pop %v625
        %v636 = vrcp.pop %v628
        %v637 = vrcp.pop %v631
        %v638 = vrcp.pop %v634
        %v639 = vmul.f32 %v616, %v635
        %v640 = vmul.f32 %v618, %v636
        %v641 = vmul.f32 %v620, %v637
        %v642 = vmul.f32 %v622, %v638
        %v643 = vpack.c.bf16 %v639, %v639
        %v644 = vpack.c.bf16 %v640, %v640
        %v645 = vpack.c.bf16 %v641, %v641
        %v646 = vpack.c.bf16 %v642, %v642
        %647 = vrot.lane.b32.xlu0 %v503, 96
        %v648 = vpop.permute.xlu0 %647
        %v650 = vsel %vm598, %v643, 0
        %vm652 = vcmask 1043456
        %v654 = vsel %vm652, %v648, 0
        %656 = vmatpush.bf16.msra.mxu0 0
        %657 = vmatpush.bf16.msra.mxu0 0
        %658 = vmatpush.bf16.msra.mxu0 0
        %659 = vmatpush.bf16.msra.mxu0 0
        %660 = vmatpush.bf16.msra.mxu0 0
        %661 = vmatpush.bf16.msra.mxu0 0
        %662 = vmatpush.bf16.msra.mxu0 0
        %663 = vmatpush.bf16.msra.mxu0 %v654
        %664 = vmatmul.bf16.gmra.mxu0 %v650
        %v665 = vpop.f32.mrf.mxu0
        %v666 = vadd.f32 0.0, %v665
        %v667 = vpop.f32.mrf.mxu0
        %668 = vdwg.mxu0
        %669 = vrot.lane.b32.xlu0 %v528, 96
        %v670 = vpop.permute.xlu0 %669
        %v672 = vsel %vm598, %v644, 0
        %v675 = vsel %vm652, %v670, 0
        %677 = vmatpush.bf16.msra.mxu0 0
        %678 = vmatpush.bf16.msra.mxu0 0
        %679 = vmatpush.bf16.msra.mxu0 0
        %680 = vmatpush.bf16.msra.mxu0 0
        %681 = vmatpush.bf16.msra.mxu0 0
        %682 = vmatpush.bf16.msra.mxu0 0
        %683 = vmatpush.bf16.msra.mxu0 0
        %684 = vmatpush.bf16.msra.mxu0 %v675
        %685 = vmatmul.bf16.gmra.mxu0 %v672
        %v686 = vpop.f32.mrf.mxu0
        %v687 = vadd.f32 0.0, %v686
        %v688 = vpop.f32.mrf.mxu0
        %689 = vdwg.mxu0
        %690 = vrot.lane.b32.xlu0 %v552, 96
        %v691 = vpop.permute.xlu0 %690
        %v693 = vsel %vm598, %v645, 0
        %v696 = vsel %vm652, %v691, 0
        %698 = vmatpush.bf16.msra.mxu0 0
        %699 = vmatpush.bf16.msra.mxu0 0
        %700 = vmatpush.bf16.msra.mxu0 0
        %701 = vmatpush.bf16.msra.mxu0 0
        %702 = vmatpush.bf16.msra.mxu0 0
        %703 = vmatpush.bf16.msra.mxu0 0
        %704 = vmatpush.bf16.msra.mxu0 0
        %705 = vmatpush.bf16.msra.mxu0 %v696
        %706 = vmatmul.bf16.gmra.mxu0 %v693
        %v707 = vpop.f32.mrf.mxu0
        %v708 = vadd.f32 0.0, %v707
        %v709 = vpop.f32.mrf.mxu0
        %710 = vdwg.mxu0
        %711 = vrot.lane.b32.xlu0 %v576, 96
        %v712 = vpop.permute.xlu0 %711
        %v714 = vsel %vm598, %v646, 0
        %v717 = vsel %vm652, %v712, 0
        %719 = vmatpush.bf16.msra.mxu0 0
        %720 = vmatpush.bf16.msra.mxu0 0
        %721 = vmatpush.bf16.msra.mxu0 0
        %722 = vmatpush.bf16.msra.mxu0 0
        %723 = vmatpush.bf16.msra.mxu0 0
        %724 = vmatpush.bf16.msra.mxu0 0
        %725 = vmatpush.bf16.msra.mxu0 0
        %726 = vmatpush.bf16.msra.mxu0 %v717
        %727 = vmatmul.bf16.gmra.mxu0 %v714
        %v728 = vpop.f32.mrf.mxu0
        %v729 = vadd.f32 0.0, %v728
        %v730 = vpop.f32.mrf.mxu0
        %731 = vdwg.mxu0
        %v732 = vpack.c.bf16 %v666, %v666
        %v733 = vpack.c.bf16 %v687, %v687
        %v734 = vpack.c.bf16 %v708, %v708
        %v735 = vpack.c.bf16 %v729, %v729
        %v736 = vld [vmem:[#allocation8] sm:$0xf]
        %v737 = vld [vmem:[#allocation8 + $0x4] sm:$0xf]
        %v738 = vld [vmem:[#allocation8 + $0x8] sm:$0xf]
        %v739 = vld [vmem:[#allocation8 + $0xc] sm:$0xf]
        %v740 = vld [vmem:[#allocation8 + $0x10] sm:$0xf]
        %v741 = vld [vmem:[#allocation8 + $0x14] sm:$0xf]
        %v742 = vld [vmem:[#allocation8 + $0x18] sm:$0xf]
        %v743 = vld [vmem:[#allocation8 + $0x1c] sm:$0xf]
        %v746 = vunpack.c.l.b16 %v736
        %v747 = vunpack.c.l.b16 %v737
        %v748 = vpack.c.b16 %v747, %v746
        %v751 = vsel %vm506, %v732, 0
        %753 = vmatpush.bf16.msra.mxu0 0
        %754 = vmatpush.bf16.msra.mxu0 0
        %755 = vmatpush.bf16.msra.mxu0 0
        %756 = vmatpush.bf16.msra.mxu0 0
        %757 = vmatpush.bf16.msra.mxu0 0
        %758 = vmatpush.bf16.msra.mxu0 0
        %759 = vmatpush.bf16.msra.mxu0 0
        %760 = vmatpush.bf16.msra.mxu0 %v748
        %761 = vmatmul.bf16.gmra.mxu0 %v751
        %v762 = vpop.f32.mrf.mxu0
        %v763 = vadd.f32 0.0, %v762
        %v764 = vpop.f32.mrf.mxu0
        %765 = vdwg.mxu0
        %v768 = vunpack.c.l.b16 %v738
        %v769 = vunpack.c.l.b16 %v739
        %v770 = vpack.c.b16 %v769, %v768
        %v773 = vsel %vm506, %v733, 0
        %775 = vmatpush.bf16.msra.mxu0 0
        %776 = vmatpush.bf16.msra.mxu0 0
        %777 = vmatpush.bf16.msra.mxu0 0
        %778 = vmatpush.bf16.msra.mxu0 0
        %779 = vmatpush.bf16.msra.mxu0 0
        %780 = vmatpush.bf16.msra.mxu0 0
        %781 = vmatpush.bf16.msra.mxu0 0
        %782 = vmatpush.bf16.msra.mxu0 %v770
        %783 = vmatmul.bf16.gmra.mxu0 %v773
        %v784 = vpop.f32.mrf.mxu0
        %v785 = vadd.f32 0.0, %v784
        %v786 = vpop.f32.mrf.mxu0
        %787 = vdwg.mxu0
        %v790 = vunpack.c.l.b16 %v740
        %v791 = vunpack.c.l.b16 %v741
        %v792 = vpack.c.b16 %v791, %v790
        %v795 = vsel %vm506, %v734, 0
        %797 = vmatpush.bf16.msra.mxu0 0
        %798 = vmatpush.bf16.msra.mxu0 0
        %799 = vmatpush.bf16.msra.mxu0 0
        %800 = vmatpush.bf16.msra.mxu0 0
        %801 = vmatpush.bf16.msra.mxu0 0
        %802 = vmatpush.bf16.msra.mxu0 0
        %803 = vmatpush.bf16.msra.mxu0 0
        %804 = vmatpush.bf16.msra.mxu0 %v792
        %805 = vmatmul.bf16.gmra.mxu0 %v795
        %v806 = vpop.f32.mrf.mxu0
        %v807 = vadd.f32 0.0, %v806
        %v808 = vpop.f32.mrf.mxu0
        %809 = vdwg.mxu0
        %v812 = vunpack.c.l.b16 %v742
        %v813 = vunpack.c.l.b16 %v743
        %v814 = vpack.c.b16 %v813, %v812
        %v817 = vsel %vm506, %v735, 0
        %819 = vmatpush.bf16.msra.mxu0 0
        %820 = vmatpush.bf16.msra.mxu0 0
        %821 = vmatpush.bf16.msra.mxu0 0
        %822 = vmatpush.bf16.msra.mxu0 0
        %823 = vmatpush.bf16.msra.mxu0 0
        %824 = vmatpush.bf16.msra.mxu0 0
        %825 = vmatpush.bf16.msra.mxu0 0
        %826 = vmatpush.bf16.msra.mxu0 %v814
        %827 = vmatmul.bf16.gmra.mxu0 %v817
        %v828 = vpop.f32.mrf.mxu0
        %v829 = vadd.f32 0.0, %v828
        %v830 = vpop.f32.mrf.mxu0
        %831 = vdwg.mxu0
        %v832 = vadd.f32 %v763, %v785
        %v833 = vadd.f32 %v832, %v807
        %v834 = vadd.f32 %v833, %v829
        %v835 = vld [vmem:[%s7] sm:$0x1]
        %v837 = vperm.slane %v835, 0
        %v839 = vadd.f32 %v834, %v837
        %840 = vst.msk [vmem:[%s370] sm:$0xff] %vm373, %v839
        %s841 = sand.u32 %s208, 1
        %s842 = scalar_lea.sflag [#allocation4], %s841
        %s843 = sand.u32 %s208, 1
        %s844 = smul.addr %s843, 8
        %s845 = scalar_lea.vmem [#allocation10], %s844
        // Predicated region
        $region69: #{tpu_custom_call.1} parent=51 // pred_check
          %p846 = pneg %p218
        $region70: #{tpu_custom_call.1} parent=51 // pred_check_branch
          %848 = sbr.rel (%p846) target = $region72
        $region71: #{tpu_custom_call.1} parent=51 // pred_region
          %850 = vsyncadd %s842, 0
          %s851 = smul.addr %s27, 8
          %s852 = scalar_lea.hbm %s8, %s851
          %s854 = sshll.u32 %s845, 4
          %s855 = int_to_ptr.vmem [resolvable:$true] %s854
          %s856 = sshll.u32 %s852, 4
          %s857 = int_to_ptr.hbm [resolvable:$true] %s856
          %859 = dma.vmem_to_hbm [thread:$0]  %s855, 128, %s857, %s842
        $region72: #{tpu_custom_call.1} parent=51 // pred_fallthru
          _
      $region52: #{tpu_custom_call.1} parent=5 // pred_fallthru
        _
      %p860 = scmp.le.s32.totalorder 2, %s22
      // Predicated region
      $region73: #{tpu_custom_call.1} parent=5 // pred_check
        %p861 = pneg %p860
      $region74: #{tpu_custom_call.1} parent=5 // pred_check_branch
        %863 = sbr.rel (%p861) target = $region76
      $region75: #{tpu_custom_call.1} parent=5 // pred_region
        %s864 = ssub.s32 %s22, 2
        // Predicated region
        $region77: #{tpu_custom_call.1} parent=75 // pred_check
          %p865 = pneg %p224
        $region78: #{tpu_custom_call.1} parent=75 // pred_check_branch
          %867 = sbr.rel (%p865) target = $region80
        $region79: #{tpu_custom_call.1} parent=75 // pred_region
          %s868 = sand.u32 %s209, 1
          %s869 = scalar_lea.sflag [#allocation4], %s868
          %s870 = sand.u32 %s209, 1
          %s871 = smul.addr %s870, 8
          %s872 = scalar_lea.vmem [#allocation10], %s871
          %874 = dma.done %s869, 128
        $region80: #{tpu_custom_call.1} parent=75 // pred_fallthru
          _
      $region76: #{tpu_custom_call.1} parent=5 // pred_fallthru
        _
    $region6: #{tpu_custom_call.1} parent=1 // loop_footer
      %s26 = sadd.s32 1, %s22
    $region7: #{tpu_custom_call.1} parent=1 // loop_footer_branch
      %21 = sbr.rel target = $region3
    $region8: #{tpu_custom_call.1} parent=1 // loop_exit
      _
    %875 = vsyncpa [#allocation3], 1
    %s876 = scalar_lea.sflag [#allocation3], 1
    %877 = vsyncpa %s876, 1
    %878 = vsyncpa [#allocation6], 1
    %879 = vsyncpa [#allocation9], 1
    %880 = vsyncpa [#allocation4], 1
    %s881 = scalar_lea.sflag [#allocation4], 1
    %882 = vsyncpa %s881, 1

</llo_original>
